<compile_context>
chip_gen: v7x
topology: tpu7x:2x2x1
jax: 0.10.0
libtpu: 0.0.40
codegen_flags: <defaults>
</compile_context>

<pallas_src>
import jax
import jax.numpy as jnp
from jax.experimental import pallas as pl
from jax.experimental.pallas import tpu as pltpu


def _rotate_gather_kernel(day_ref, rels_ref, w_ref, rel1_ref, rel2_ref,
                          real_ref, img_ref):
    """Fused relation gather + complex rotation for one (TB, D) batch block.

    day_ref:  (TB, 1)  f32      rels_ref: (TB, 1)  i32
    w_ref:    (1, D)   f32      rel1_ref/rel2_ref: (Nr, D) f32 (resident)
    real_ref/img_ref:  (TB, D)  f32 outputs (lane-dense, unmasked stores).
    """
    TB = day_ref.shape[0]
    Nr = rel1_ref.shape[0]

    # In-kernel gather on the otherwise-idle MXU: one_hot(rels, Nr) @ table.
    onehot = (rels_ref[...] ==
              jax.lax.broadcasted_iota(jnp.int32, (TB, Nr), 1)
              ).astype(jnp.float32)                         # (TB, Nr)
    r1 = jnp.dot(onehot, rel1_ref[...], preferred_element_type=jnp.float32)
    r2 = jnp.dot(onehot, rel2_ref[...], preferred_element_type=jnp.float32)

    phase = w_ref[...] * day_ref[...]                       # (TB, D) broadcast
    d_img = jnp.sin(phase)
    d_real = jnp.cos(phase)

    real_ref[...] = d_real * r1 - d_img * r2
    img_ref[...] = d_real * r2 + d_img * r1


def _rotate_kernel(day_ref, w_ref, r1_ref, r2_ref, real_ref, img_ref):
    """Fallback (pre-gathered r1/r2) rotation for one (TB, D) batch block."""
    phase = w_ref[...] * day_ref[...]
    d_img = jnp.sin(phase)
    d_real = jnp.cos(phase)
    r1 = r1_ref[...]
    r2 = r2_ref[...]
    real_ref[...] = d_real * r1 - d_img * r2
    img_ref[...] = d_real * r2 + d_img * r1


def noname_forward(heads, rels, tails, day, params):
    """heads/rels/tails: int32 (B,), day: float (B,).
    params: dict with ent1 (Ne,D), ent2 (Ne,D), rel1 (Nr,D), rel2 (Nr,D), w (D,).
    Returns (heads_real, rels_real, tails_real, heads_img, rels_img, tails_img),
    each (B, D) float32 -- same order as the PyTorch module."""
    ent1, ent2 = params["ent1"], params["ent2"]
    rel1, rel2 = params["rel1"], params["rel2"]
    w = params["w"]
    B = heads.shape[0]
    Nr, D = rel1.shape

    # Pure pass-through entity lookups: plain XLA gathers, no kernel.
    heads_real = jnp.take(ent1, heads, axis=0)
    tails_real = jnp.take(ent1, tails, axis=0)
    heads_img = jnp.take(ent2, heads, axis=0)
    tails_img = jnp.take(ent2, tails, axis=0)

    # Batch tiling: multiple of 8, capped at 1024, balanced so padding waste
    # is bounded by < one block and the grid divides B_pad exactly.
    B8 = ((B + 7) // 8) * 8
    n_blocks = pl.cdiv(B8, 1024)
    TB = ((pl.cdiv(B8, n_blocks) + 7) // 8) * 8
    B_pad = n_blocks * TB
    pad = B_pad - B

    day2d = day.astype(jnp.float32).reshape(B, 1)
    w2d = w.reshape(1, D)

    out_shape = (jax.ShapeDtypeStruct((B_pad, D), jnp.float32),
                 jax.ShapeDtypeStruct((B_pad, D), jnp.float32))
    out_specs = (pl.BlockSpec((TB, D), lambda i: (i, 0)),
                 pl.BlockSpec((TB, D), lambda i: (i, 0)))
    cparams = pltpu.CompilerParams(dimension_semantics=("parallel",))

    # Fuse the gather into the kernel when both relation tables fit VMEM.
    gather_in_kernel = (2 * Nr * D * 4) <= (4 << 20)

    if gather_in_kernel:
        rels2d = rels.astype(jnp.int32).reshape(B, 1)
        if pad:  # only the tiny (B,1) columns are padded -- a few KiB at most
            day2d = jnp.pad(day2d, ((0, pad), (0, 0)))
            rels2d = jnp.pad(rels2d, ((0, pad), (0, 0)))
        grid_spec = pltpu.PrefetchScalarGridSpec(
            num_scalar_prefetch=0,
            grid=(B_pad // TB,),
            in_specs=[
                pl.BlockSpec((TB, 1), lambda i: (i, 0)),   # day block
                pl.BlockSpec((TB, 1), lambda i: (i, 0)),   # rels block (i32)
                pl.BlockSpec((1, D), lambda i: (0, 0)),    # w (resident)
                pl.BlockSpec((Nr, D), lambda i: (0, 0)),   # rel1 table (resident)
                pl.BlockSpec((Nr, D), lambda i: (0, 0)),   # rel2 table (resident)
            ],
            out_specs=out_specs,
        )
        rels_real_p, rels_img_p = pl.pallas_call(
            _rotate_gather_kernel,
            grid_spec=grid_spec,
            out_shape=out_shape,
            compiler_params=cparams,
        )(day2d, rels2d, w2d, rel1, rel2)
    else:
        # Large relation tables: gather in the wrapper, rotate in the kernel.
        r1 = jnp.take(rel1, rels, axis=0)
        r2 = jnp.take(rel2, rels, axis=0)
        if pad:
            day2d = jnp.pad(day2d, ((0, pad), (0, 0)))
            r1 = jnp.pad(r1, ((0, pad), (0, 0)))
            r2 = jnp.pad(r2, ((0, pad), (0, 0)))
        grid_spec = pltpu.PrefetchScalarGridSpec(
            num_scalar_prefetch=0,
            grid=(B_pad // TB,),
            in_specs=[
                pl.BlockSpec((TB, 1), lambda i: (i, 0)),   # day block
                pl.BlockSpec((1, D), lambda i: (0, 0)),    # w (resident)
                pl.BlockSpec((TB, D), lambda i: (i, 0)),   # rel1[rels] block
                pl.BlockSpec((TB, D), lambda i: (i, 0)),   # rel2[rels] block
            ],
            out_specs=out_specs,
        )
        rels_real_p, rels_img_p = pl.pallas_call(
            _rotate_kernel,
            grid_spec=grid_spec,
            out_shape=out_shape,
            compiler_params=cparams,
        )(day2d, w2d, r1, r2)

    rels_real = rels_real_p[:B] if pad else rels_real_p
    rels_img = rels_img_p[:B] if pad else rels_img_p
    return heads_real, rels_real, tails_real, heads_img, rels_img, tails_img


def noname_forward_ref(heads, rels, tails, day, params):
    """Pure-JAX reference of NoName.forward."""
    w = params["w"].reshape(1, -1)
    d_img = jnp.sin(w * day[:, None])
    d_real = jnp.cos(w * day[:, None])
    r1 = params["rel1"][rels]
    r2 = params["rel2"][rels]
    return (
        params["ent1"][heads],
        d_real * r1 - d_img * r2,
        params["ent1"][tails],
        params["ent2"][heads],
        d_real * r2 + d_img * r1,
        params["ent2"][tails],
    )


if __name__ == "__main__":
    # config-equivalent small sizes
    n_ent, n_rel, d_model = 64, 16, 128
    batch = 8

    key = jax.random.PRNGKey(0)
    k_e1, k_e2, k_r1, k_r2, k_h, k_r, k_t, k_d = jax.random.split(key, 8)

    params = {
        "ent1": jax.random.normal(k_e1, (n_ent, d_model), jnp.float32) * 0.1,
        "ent2": jax.random.normal(k_e2, (n_ent, d_model), jnp.float32) * 0.1,
        "rel1": jax.random.normal(k_r1, (n_rel, d_model), jnp.float32) * 0.1,
        "rel2": jax.random.normal(k_r2, (n_rel, d_model), jnp.float32) * 0.1,
        # w = 1 / 10 ** linspace(0, 9, d_model), exactly as in __init__
        "w": (1.0 / (10.0 ** jnp.linspace(0.0, 9.0, d_model))).astype(jnp.float32),
    }

    heads = jax.random.randint(k_h, (batch,), 0, n_ent, jnp.int32)
    rels = jax.random.randint(k_r, (batch,), 0, n_rel, jnp.int32)
    tails = jax.random.randint(k_t, (batch,), 0, n_ent, jnp.int32)
    day = jax.random.randint(k_d, (batch,), 1, 31, jnp.int32).astype(jnp.float32)

    outs = noname_forward(heads, rels, tails, day, params)
    outs = jax.block_until_ready(outs)

    refs = noname_forward_ref(heads, rels, tails, day, params)
    for o, r in zip(outs, refs):
        assert o.shape == r.shape and o.dtype == r.dtype
        assert jnp.allclose(o, r, atol=1e-5, rtol=1e-5), "mismatch vs reference"

    print("KERNEL_OK")
</pallas_src>

<mosaic_0001>
module attributes {stable_mosaic.version = 11 : i64} {
  func.func @_rotate_gather_kernel(%arg0: i32, %arg1: memref<8x1xf32, #tpu.memory_space<vmem>>, %arg2: memref<8x1xi32, #tpu.memory_space<vmem>>, %arg3: memref<1x128xf32, #tpu.memory_space<vmem>>, %arg4: memref<16x128xf32, #tpu.memory_space<vmem>>, %arg5: memref<16x128xf32, #tpu.memory_space<vmem>>, %arg6: memref<8x128xf32, #tpu.memory_space<vmem>>, %arg7: memref<8x128xf32, #tpu.memory_space<vmem>>) attributes {dimension_semantics = [#tpu.dimension_semantics<parallel>], iteration_bounds = array<i64: 1>, scalar_prefetch = 0 : i64, scratch_operands = 0 : i64, tpu.core_type = #tpu.core_type<tc>, window_params = [{transform_indices = @transform_0, window_bounds = array<i64: 8, 1>}, {transform_indices = @transform_1, window_bounds = array<i64: 8, 1>}, {pipeline_mode = #tpu.pipeline_mode<synchronous>, transform_indices = @transform_2, window_bounds = array<i64: 1, 128>}, {pipeline_mode = #tpu.pipeline_mode<synchronous>, transform_indices = @transform_3, window_bounds = array<i64: 16, 128>}, {pipeline_mode = #tpu.pipeline_mode<synchronous>, transform_indices = @transform_4, window_bounds = array<i64: 16, 128>}, {transform_indices = @transform_5, window_bounds = array<i64: 8, 128>}, {transform_indices = @transform_6, window_bounds = array<i64: 8, 128>}]} {
    %c0 = arith.constant 0 : index
    %c0_0 = arith.constant 0 : index
    %0 = vector.load %arg2[%c0, %c0_0] : memref<8x1xi32, #tpu.memory_space<vmem>>, vector<8x1xi32>
    %1 = tpu.iota {dimensions = array<i32: 1>} : vector<8x16xi32>
    %2 = vector.broadcast %0 : vector<8x1xi32> to vector<8x16xi32>
    %3 = arith.cmpi eq, %2, %1 : vector<8x16xi32>
    %4 = arith.extui %3 : vector<8x16xi1> to vector<8x16xi32>
    %5 = arith.sitofp %4 : vector<8x16xi32> to vector<8x16xf32>
    %c0_1 = arith.constant 0 : index
    %c0_2 = arith.constant 0 : index
    %6 = vector.load %arg4[%c0_1, %c0_2] : memref<16x128xf32, #tpu.memory_space<vmem>>, vector<16x128xf32>
    %cst = arith.constant dense<0.000000e+00> : vector<8x128xf32>
    %7 = tpu.matmul %5, %6, %cst {dimension_numbers = #tpu.dot_dimension_numbers<[1], [0], [0], [1], [0, 0, 1, 1], [], []>} : vector<8x16xf32>, vector<16x128xf32>, vector<8x128xf32> -> vector<8x128xf32>
    %c0_3 = arith.constant 0 : index
    %c0_4 = arith.constant 0 : index
    %8 = vector.load %arg5[%c0_3, %c0_4] : memref<16x128xf32, #tpu.memory_space<vmem>>, vector<16x128xf32>
    %cst_5 = arith.constant dense<0.000000e+00> : vector<8x128xf32>
    %9 = tpu.matmul %5, %8, %cst_5 {dimension_numbers = #tpu.dot_dimension_numbers<[1], [0], [0], [1], [0, 0, 1, 1], [], []>} : vector<8x16xf32>, vector<16x128xf32>, vector<8x128xf32> -> vector<8x128xf32>
    %c0_6 = arith.constant 0 : index
    %c0_7 = arith.constant 0 : index
    %10 = vector.load %arg3[%c0_6, %c0_7] : memref<1x128xf32, #tpu.memory_space<vmem>>, vector<1x128xf32>
    %c0_8 = arith.constant 0 : index
    %c0_9 = arith.constant 0 : index
    %11 = vector.load %arg1[%c0_8, %c0_9] : memref<8x1xf32, #tpu.memory_space<vmem>>, vector<8x1xf32>
    %12 = vector.broadcast %10 : vector<1x128xf32> to vector<8x128xf32>
    %13 = vector.broadcast %11 : vector<8x1xf32> to vector<8x128xf32>
    %14 = arith.mulf %12, %13 : vector<8x128xf32>
    %15 = math.sin %14 : vector<8x128xf32>
    %16 = math.cos %14 : vector<8x128xf32>
    %17 = arith.mulf %16, %7 : vector<8x128xf32>
    %18 = arith.mulf %15, %9 : vector<8x128xf32>
    %19 = arith.subf %17, %18 : vector<8x128xf32>
    %c0_10 = arith.constant 0 : index
    %c0_11 = arith.constant 0 : index
    %20 = vector.load %arg6[%c0_10, %c0_11] : memref<8x128xf32, #tpu.memory_space<vmem>>, vector<8x128xf32>
    tpu.vector_store %arg6[%c0_10, %c0_11], %19 {strides = array<i32>} : memref<8x128xf32, #tpu.memory_space<vmem>>, vector<8x128xf32>,
    %21 = arith.mulf %16, %9 : vector<8x128xf32>
    %22 = arith.mulf %15, %7 : vector<8x128xf32>
    %23 = arith.addf %21, %22 : vector<8x128xf32>
    %c0_12 = arith.constant 0 : index
    %c0_13 = arith.constant 0 : index
    %24 = vector.load %arg7[%c0_12, %c0_13] : memref<8x128xf32, #tpu.memory_space<vmem>>, vector<8x128xf32>
    tpu.vector_store %arg7[%c0_12, %c0_13], %23 {strides = array<i32>} : memref<8x128xf32, #tpu.memory_space<vmem>>, vector<8x128xf32>,
    return
  }
  func.func @transform_0(%arg0: i32) -> (i32, i32) {
    %c0_i32 = arith.constant 0 : i32
    %c0_i32_0 = arith.constant 0 : i32
    return %arg0, %c0_i32 : i32, i32
  }
  func.func @transform_1(%arg0: i32) -> (i32, i32) {
    %c0_i32 = arith.constant 0 : i32
    %c0_i32_0 = arith.constant 0 : i32
    return %arg0, %c0_i32 : i32, i32
  }
  func.func @transform_2(%arg0: i32) -> (i32, i32) {
    %c0_i32 = arith.constant 0 : i32
    %c0_i32_0 = arith.constant 0 : i32
    %c0_i32_1 = arith.constant 0 : i32
    return %c0_i32, %c0_i32_0 : i32, i32
  }
  func.func @transform_3(%arg0: i32) -> (i32, i32) {
    %c0_i32 = arith.constant 0 : i32
    %c0_i32_0 = arith.constant 0 : i32
    %c0_i32_1 = arith.constant 0 : i32
    return %c0_i32, %c0_i32_0 : i32, i32
  }
  func.func @transform_4(%arg0: i32) -> (i32, i32) {
    %c0_i32 = arith.constant 0 : i32
    %c0_i32_0 = arith.constant 0 : i32
    %c0_i32_1 = arith.constant 0 : i32
    return %c0_i32, %c0_i32_0 : i32, i32
  }
  func.func @transform_5(%arg0: i32) -> (i32, i32) {
    %c0_i32 = arith.constant 0 : i32
    %c0_i32_0 = arith.constant 0 : i32
    return %arg0, %c0_i32 : i32, i32
  }
  func.func @transform_6(%arg0: i32) -> (i32, i32) {
    %c0_i32 = arith.constant 0 : i32
    %c0_i32_0 = arith.constant 0 : i32
    return %arg0, %c0_i32 : i32, i32
  }
}

</mosaic_0001>

<llo_original>
// kernel: tpu_custom_call.1
$region0: #{tpu_custom_call.1}
  #allocation0 [shape = 'u32[]', space=smem, size = 0x4, offset = 0x4, fixed_abs, tag = 'smem constant byte address 0x4 - core index']
  #allocation1 [shape = 'u32[144,128]{1,0:T(1,128)}', space=vmem, size = 0x12000, scoped, tag = 'internal scratch']
  %s0 = inlined_call_operand.vmem [shape: f32[8,1], index: 0, kind: input, shape index: {}]
  %s1 = inlined_call_operand.vmem [shape: s32[8,1], index: 1, kind: input, shape index: {}]
  %s2 = inlined_call_operand.vmem [shape: f32[1,128], index: 2, kind: input, shape index: {}]
  %s3 = inlined_call_operand.vmem [shape: f32[16,128], index: 3, kind: input, shape index: {}]
  %s4 = inlined_call_operand.vmem [shape: f32[16,128], index: 4, kind: input, shape index: {}]
  %s5 = inlined_call_operand.hbm [shape: f32[8,128], index: 5, kind: output, shape index: {0}]
  %s6 = inlined_call_operand.hbm [shape: f32[8,128], index: 6, kind: output, shape index: {1}]
  %7 = xla_tuple %s5, %s6
  %s8 = sld [smem:[#allocation0]]
  $region38: #{tpu_custom_call.1} parent=0
    _
  %s10 = ssub.s32 1, %s8
  %s11 = scalar_select 0, %s10, %s8
  $region1: #{tpu_custom_call.1} parent=0
    #allocation2 [shape = 'u8[4096]{0}', space=vmem, size = 0x1000, scoped, tag = 'output window, operand 0, single buffered']
    #allocation3 [shape = 's32[1]{0}', space=sflag, size = 0x4, scoped, tag = 'scoped memory for tpu_custom_call.1']
    #allocation4 [shape = 'u8[4096]{0}', space=vmem, size = 0x1000, scoped, tag = 'output window, operand 1, single buffered']
    #allocation5 [shape = 's32[1]{0}', space=sflag, size = 0x4, scoped, tag = 'scoped memory for tpu_custom_call.1']
    %12 = vsyncpa [#allocation3], 0
    %13 = vsyncpa [#allocation5], 0
    // Predicated region
    $region2: #{tpu_custom_call.1} parent=1 // pred_check
      _
    $region3: #{tpu_custom_call.1} parent=1 // pred_check_branch
      %15 = sbr.rel (0) target = $region5
    $region4: #{tpu_custom_call.1} parent=1 // pred_region
      _
    $region5: #{tpu_custom_call.1} parent=1 // pred_fallthru
      _
    // Predicated region
    $region6: #{tpu_custom_call.1} parent=1 // pred_check
      _
    $region7: #{tpu_custom_call.1} parent=1 // pred_check_branch
      %17 = sbr.rel (0) target = $region9
    $region8: #{tpu_custom_call.1} parent=1 // pred_region
      _
    $region9: #{tpu_custom_call.1} parent=1 // pred_fallthru
      _
    // Predicated region
    $region10: #{tpu_custom_call.1} parent=1 // pred_check
      _
    $region11: #{tpu_custom_call.1} parent=1 // pred_check_branch
      %19 = sbr.rel (0) target = $region13
    $region12: #{tpu_custom_call.1} parent=1 // pred_region
      _
    $region13: #{tpu_custom_call.1} parent=1 // pred_fallthru
      _
    // Predicated region
    $region14: #{tpu_custom_call.1} parent=1 // pred_check
      _
    $region15: #{tpu_custom_call.1} parent=1 // pred_check_branch
      %21 = sbr.rel (0) target = $region17
    $region16: #{tpu_custom_call.1} parent=1 // pred_region
      _
    $region17: #{tpu_custom_call.1} parent=1 // pred_fallthru
      _
    // Predicated region
    $region18: #{tpu_custom_call.1} parent=1 // pred_check
      _
    $region19: #{tpu_custom_call.1} parent=1 // pred_check_branch
      %23 = sbr.rel (0) target = $region21
    $region20: #{tpu_custom_call.1} parent=1 // pred_region
      _
    $region21: #{tpu_custom_call.1} parent=1 // pred_fallthru
      _
    %v24 = vld [vmem:[%s1] sm:$0xff]
    %v25 = vlaneseq
    %v26 = vand.u32 %v25, 127
    %27 = vset.pattern.permute.xlu0 0
    %28 = vperm.xlu0 %27, %v24
    %v29 = vpop.permute.xlu0 %28
    %vm30 = vcmp.eq.s32.totalorder %v29, %v26
    %v31 = vsel %vm30, 1, 0
    %v32 = vcvt.s32.f32 %v31
    %v33 = vld [vmem:[%s3] sm:$0xff]
    %v34 = vld [vmem:[%s3 + $0x8] sm:$0xff]
    %vm35 = vcmask 130048
    %v37 = vsel %vm35, %v32, 0
    %39 = vmatprep.subr.mxu0 0.0
    %40 = vmatpush1.msra.mxu0 %v33
    %41 = vmatprep.subr.mxu0 0.0
    %42 = vmatpush1.msra.mxu0 %v34
    %43 = vmatprep.subr.mxu0 0.0
    %44 = vmatpush1.msra.mxu0 0.0
    %45 = vmatprep.subr.mxu0 0.0
    %46 = vmatpush1.msra.mxu0 0.0
    %47 = vmatprep.subr.mxu0 0.0
    %48 = vmatpush1.msra.mxu0 0.0
    %49 = vmatprep.subr.mxu0 0.0
    %50 = vmatpush1.msra.mxu0 0.0
    %51 = vmatprep.subr.mxu0 0.0
    %52 = vmatpush1.msra.mxu0 0.0
    %53 = vmatprep.subr.mxu0 0.0
    %54 = vmatpush1.msra.mxu0 0.0
    %55 = vmatprep.subr.mxu0 0.0
    %56 = vmatpush1.msra.mxu0 0.0
    %57 = vmatprep.subr.mxu0 0.0
    %58 = vmatpush1.msra.mxu0 0.0
    %59 = vmatprep.subr.mxu0 0.0
    %60 = vmatpush1.msra.mxu0 0.0
    %61 = vmatprep.subr.mxu0 0.0
    %62 = vmatpush1.msra.mxu0 0.0
    %63 = vmatprep.subr.mxu0 0.0
    %64 = vmatpush1.msra.mxu0 0.0
    %65 = vmatprep.subr.mxu0 0.0
    %66 = vmatpush1.msra.mxu0 0.0
    %67 = vmatprep.subr.mxu0 0.0
    %68 = vmatpush1.msra.mxu0 0.0
    %69 = vmatprep.subr.mxu0 0.0
    %70 = vmatpush1.msra.mxu0 0.0
    %71 = vmatprep.subr.mxu0 0.0
    %72 = vmatpush1.msra.mxu0 0.0
    %73 = vmatprep.subr.mxu0 0.0
    %74 = vmatpush1.msra.mxu0 0.0
    %75 = vmatprep.subr.mxu0 0.0
    %76 = vmatpush1.msra.mxu0 0.0
    %77 = vmatprep.subr.mxu0 0.0
    %78 = vmatpush1.msra.mxu0 0.0
    %79 = vmatprep.subr.mxu0 0.0
    %80 = vmatpush1.msra.mxu0 0.0
    %81 = vmatprep.subr.mxu0 0.0
    %82 = vmatpush1.msra.mxu0 0.0
    %83 = vmatprep.subr.mxu0 0.0
    %84 = vmatpush1.msra.mxu0 0.0
    %85 = vmatprep.subr.mxu0 0.0
    %86 = vmatpush1.msra.mxu0 0.0
    %87 = vmatprep.subr.mxu0 0.0
    %88 = vmatpush1.msra.mxu0 0.0
    %89 = vmatprep.subr.mxu0 0.0
    %90 = vmatpush1.msra.mxu0 0.0
    %91 = vmatprep.subr.mxu0 0.0
    %92 = vmatpush1.msra.mxu0 0.0
    %93 = vmatprep.subr.mxu0 0.0
    %94 = vmatpush1.msra.mxu0 0.0
    %95 = vmatprep.subr.mxu0 0.0
    %96 = vmatpush1.msra.mxu0 0.0
    %97 = vmatprep.subr.mxu0 0.0
    %98 = vmatpush1.msra.mxu0 0.0
    %99 = vmatprep.subr.mxu0 0.0
    %100 = vmatpush1.msra.mxu0 0.0
    %101 = vmatprep.subr.mxu0 0.0
    %102 = vmatpush1.msra.mxu0 0.0
    %103 = vmatprep.mubr.f32.mxu0 0.0
    %104 = vmatmul.mubr.f32.gmra.mrb[0].mxu0 %v37
    %v105 = vpop.f32.mrb[0].mxu0
    %v106 = vadd.f32 0.0, %v105
    %v107 = vpop.f32.mrb[0].mxu0
    %108 = vdwg.mxu0
    %v109 = vld [vmem:[%s4] sm:$0xff]
    %v110 = vld [vmem:[%s4 + $0x8] sm:$0xff]
    %111 = vmatprep.subr.mxu0 0.0
    %112 = vmatpush1.msra.mxu0 %v109
    %113 = vmatprep.subr.mxu0 0.0
    %114 = vmatpush1.msra.mxu0 %v110
    %115 = vmatprep.subr.mxu0 0.0
    %116 = vmatpush1.msra.mxu0 0.0
    %117 = vmatprep.subr.mxu0 0.0
    %118 = vmatpush1.msra.mxu0 0.0
    %119 = vmatprep.subr.mxu0 0.0
    %120 = vmatpush1.msra.mxu0 0.0
    %121 = vmatprep.subr.mxu0 0.0
    %122 = vmatpush1.msra.mxu0 0.0
    %123 = vmatprep.subr.mxu0 0.0
    %124 = vmatpush1.msra.mxu0 0.0
    %125 = vmatprep.subr.mxu0 0.0
    %126 = vmatpush1.msra.mxu0 0.0
    %127 = vmatprep.subr.mxu0 0.0
    %128 = vmatpush1.msra.mxu0 0.0
    %129 = vmatprep.subr.mxu0 0.0
    %130 = vmatpush1.msra.mxu0 0.0
    %131 = vmatprep.subr.mxu0 0.0
    %132 = vmatpush1.msra.mxu0 0.0
    %133 = vmatprep.subr.mxu0 0.0
    %134 = vmatpush1.msra.mxu0 0.0
    %135 = vmatprep.subr.mxu0 0.0
    %136 = vmatpush1.msra.mxu0 0.0
    %137 = vmatprep.subr.mxu0 0.0
    %138 = vmatpush1.msra.mxu0 0.0
    %139 = vmatprep.subr.mxu0 0.0
    %140 = vmatpush1.msra.mxu0 0.0
    %141 = vmatprep.subr.mxu0 0.0
    %142 = vmatpush1.msra.mxu0 0.0
    %143 = vmatprep.subr.mxu0 0.0
    %144 = vmatpush1.msra.mxu0 0.0
    %145 = vmatprep.subr.mxu0 0.0
    %146 = vmatpush1.msra.mxu0 0.0
    %147 = vmatprep.subr.mxu0 0.0
    %148 = vmatpush1.msra.mxu0 0.0
    %149 = vmatprep.subr.mxu0 0.0
    %150 = vmatpush1.msra.mxu0 0.0
    %151 = vmatprep.subr.mxu0 0.0
    %152 = vmatpush1.msra.mxu0 0.0
    %153 = vmatprep.subr.mxu0 0.0
    %154 = vmatpush1.msra.mxu0 0.0
    %155 = vmatprep.subr.mxu0 0.0
    %156 = vmatpush1.msra.mxu0 0.0
    %157 = vmatprep.subr.mxu0 0.0
    %158 = vmatpush1.msra.mxu0 0.0
    %159 = vmatprep.subr.mxu0 0.0
    %160 = vmatpush1.msra.mxu0 0.0
    %161 = vmatprep.subr.mxu0 0.0
    %162 = vmatpush1.msra.mxu0 0.0
    %163 = vmatprep.subr.mxu0 0.0
    %164 = vmatpush1.msra.mxu0 0.0
    %165 = vmatprep.subr.mxu0 0.0
    %166 = vmatpush1.msra.mxu0 0.0
    %167 = vmatprep.subr.mxu0 0.0
    %168 = vmatpush1.msra.mxu0 0.0
    %169 = vmatprep.subr.mxu0 0.0
    %170 = vmatpush1.msra.mxu0 0.0
    %171 = vmatprep.subr.mxu0 0.0
    %172 = vmatpush1.msra.mxu0 0.0
    %173 = vmatprep.subr.mxu0 0.0
    %174 = vmatpush1.msra.mxu0 0.0
    %175 = vmatprep.mubr.f32.mxu0 0.0
    %176 = vmatmul.mubr.f32.gmra.mrb[0].mxu0 %v37
    %v177 = vpop.f32.mrb[0].mxu0
    %v178 = vadd.f32 0.0, %v177
    %v179 = vpop.f32.mrb[0].mxu0
    %180 = vdwg.mxu0
    %v181 = vld [vmem:[%s2] sm:$0x1]
    %v182 = vld [vmem:[%s0] sm:$0xff]
    %v184 = vlaneseq
    %v185 = vshrl.u32 %v184, 7
    %v186 = vsub.s32 0, %v185
    %v187 = vrot.slane %v181, %v186
    %190 = vset.pattern.permute.xlu0 0
    %191 = vperm.xlu0 %190, %v182
    %v192 = vpop.permute.xlu0 %191
    %v194 = vmul.f32 %v187, %v192
    %v195 = vand.u32 2147483647, %v194
    %vm196 = vcmp.le.f32.partialorder %v195, 0.7853982
    %vm197 = vcmp.lt.s32.totalorder %v194, 0
    %v198 = vand.u32 %v194, 2139095040
    %v199 = vshrl.u32 %v198, 23
    %v200 = vsub.s32 %v199, 127
    %v201 = vand.u32 2147483647, %v194
    %v202 = vand.u32 %v201, 8388607
    %v203 = vor.u32 %v202, 8388608
    %v204 = vsub.s32 0, %v203
    %v205 = vadd.s32 %v200, 1
    %vm206 = vcmp.gt.s32.totalorder %v205, 0
    %v207 = vsel %vm206, %v205, 0
    %v208 = vshrl.u32 %v207, 5
    %v209 = vand.u32 %v207, 31
    %v210 = vsub.s32 32, %v209
    %v211 = vshrl.u32 683565275, %v210
    %v212 = vshll.u32 683565275, %v209
    %v213 = vshrl.u32 2475754826, %v210
    %v214 = vor.u32 %v212, %v213
    %v215 = vshll.u32 2475754826, %v209
    %v216 = vshrl.u32 2131351028, %v210
    %v217 = vor.u32 %v215, %v216
    %v218 = vshll.u32 2131351028, %v209
    %v219 = vshrl.u32 2102212464, %v210
    %v220 = vor.u32 %v218, %v219
    %v221 = vshll.u32 2102212464, %v209
    %v222 = vshrl.u32 920167782, %v210
    %v223 = vor.u32 %v221, %v222
    %v224 = vshll.u32 920167782, %v209
    %v225 = vshrl.u32 1326507024, %v210
    %v226 = vor.u32 %v224, %v225
    %vm227 = vcmp.lt.s32.totalorder %v208, 1
    %vm228 = vcmp.lt.s32.totalorder %v208, 2
    %vm229 = vcmp.lt.s32.totalorder %v208, 3
    %vm230 = vcmp.lt.s32.totalorder %v208, 4
    %v231 = vsel %vm227, %v211, %v214
    %v232 = vsel %vm230, %v220, 2102212464
    %v233 = vsel %vm229, %v217, %v232
    %v234 = vsel %vm228, %v231, %v233
    %v235 = vsel %vm227, %v214, %v217
    %v236 = vsel %vm230, %v223, 920167782
    %v237 = vsel %vm229, %v220, %v236
    %v238 = vsel %vm228, %v235, %v237
    %v239 = vsel %vm227, %v217, %v220
    %v240 = vsel %vm230, %v226, 1326507024
    %v241 = vsel %vm229, %v223, %v240
    %v242 = vsel %vm228, %v239, %v241
    %v243 = vshll.u32 %v203, 8
    %v244 = vmul.u32.u64.compose %v243, %v242
    %v245 = vextract.low.u32 %v244
    %v246 = vextract.high.u32 %v244
    %v247 = vmul.u32.u64.compose %v243, %v238
    %v248 = vextract.low.u32 %v247
    %v249 = vextract.high.u32 %v247
    %v250 = vmul.u32 %v243, %v234
    %v251 = vadd.s32 %v246, %v248
    %vm252 = vc.u32 %v246, %v248
    %v253 = vadd.s32 %v249, 1
    %v254 = vsel %vm252, %v253, %v249
    %v255 = vadd.s32 %v250, %v254
    %v256 = vadd.s32 %v255, 536870912
    %v257 = vshrl.u32 %v256, 30
    %v258 = vshll.u32 %v257, 30
    %v259 = vsub.s32 %v255, %v258
    %vm260 = vcmp.lt.s32.totalorder %v259, 0
    %v261 = vsub.s32 0, %v259
    %v262 = vsel %vm260, %v261, %v259
    %v263 = vclz %v262
    %v264 = vsub.s32 %v263, 2
    %vm265 = vcmp.gt.s32.totalorder 0, %v264
    %v266 = vsel %vm265, 0, %v264
    %v267 = vsub.s32 32, %v266
    %v268 = vshll.u32 %v259, %v266
    %v269 = vshrl.u32 %v251, %v267
    %v270 = vor.u32 %v268, %v269
    %v271 = vsub.s32 4294967266, %v266
    %v272 = vadd.s32 %v271, 127
    %v273 = vshll.u32 %v272, 23
    %v274 = vor.u32 4788187, %v273
    %v275 = vand.u32 2147483647, %v274
    %v277 = vcvt.s32.f32 %v270
    %v278 = vmul.f32 %v277, %v275
    %v279 = vxor.u32 %v278, 2147483648
    %v280 = vsel %vm197, %v279, %v278
    %v281 = vsub.s32 4, %v257
    %v282 = vsel %vm197, %v281, %v257
    %v283 = vsel %vm196, %v194, %v280
    %v284 = vsel %vm196, 0, %v282
    %v285 = vcosq.f32.pop %v283
    %v286 = vsinq.f32.pop %v283
    %vm287 = vweird.f32 %v194
    %v288 = vadd.s32 %v284, 3
    %v289 = vand.u32 %v288, 3
    %vm290 = vcmp.lt.s32.totalorder %v289, 2
    %vm291 = vcmp.eq.s32.totalorder %v289, 0
    %v292 = vxor.u32 %v286, 2147483648
    %v293 = vsel %vm291, %v285, %v292
    %vm294 = vcmp.eq.s32.totalorder %v289, 2
    %v295 = vxor.u32 %v285, 2147483648
    %v296 = vsel %vm294, %v295, %v286
    %v297 = vsel %vm290, %v293, %v296
    %v298 = vsel %vm287, nan, %v297
    %v299 = vand.u32 2147483647, %v194
    %vm300 = vcmp.le.f32.partialorder %v299, 0.7853982
    %vm301 = vcmp.lt.s32.totalorder %v194, 0
    %v302 = vand.u32 %v194, 2139095040
    %v303 = vshrl.u32 %v302, 23
    %v304 = vsub.s32 %v303, 127
    %v305 = vand.u32 2147483647, %v194
    %v306 = vand.u32 %v305, 8388607
    %v307 = vor.u32 %v306, 8388608
    %v308 = vsub.s32 0, %v307
    %v309 = vadd.s32 %v304, 1
    %vm310 = vcmp.gt.s32.totalorder %v309, 0
    %v311 = vsel %vm310, %v309, 0
    %v312 = vshrl.u32 %v311, 5
    %v313 = vand.u32 %v311, 31
    %v314 = vsub.s32 32, %v313
    %v315 = vshrl.u32 683565275, %v314
    %v316 = vshll.u32 683565275, %v313
    %v317 = vshrl.u32 2475754826, %v314
    %v318 = vor.u32 %v316, %v317
    %v319 = vshll.u32 2475754826, %v313
    %v320 = vshrl.u32 2131351028, %v314
    %v321 = vor.u32 %v319, %v320
    %v322 = vshll.u32 2131351028, %v313
    %v323 = vshrl.u32 2102212464, %v314
    %v324 = vor.u32 %v322, %v323
    %v325 = vshll.u32 2102212464, %v313
    %v326 = vshrl.u32 920167782, %v314
    %v327 = vor.u32 %v325, %v326
    %v328 = vshll.u32 920167782, %v313
    %v329 = vshrl.u32 1326507024, %v314
    %v330 = vor.u32 %v328, %v329
    %vm331 = vcmp.lt.s32.totalorder %v312, 1
    %vm332 = vcmp.lt.s32.totalorder %v312, 2
    %vm333 = vcmp.lt.s32.totalorder %v312, 3
    %vm334 = vcmp.lt.s32.totalorder %v312, 4
    %v335 = vsel %vm331, %v315, %v318
    %v336 = vsel %vm334, %v324, 2102212464
    %v337 = vsel %vm333, %v321, %v336
    %v338 = vsel %vm332, %v335, %v337
    %v339 = vsel %vm331, %v318, %v321
    %v340 = vsel %vm334, %v327, 920167782
    %v341 = vsel %vm333, %v324, %v340
    %v342 = vsel %vm332, %v339, %v341
    %v343 = vsel %vm331, %v321, %v324
    %v344 = vsel %vm334, %v330, 1326507024
    %v345 = vsel %vm333, %v327, %v344
    %v346 = vsel %vm332, %v343, %v345
    %v347 = vshll.u32 %v307, 8
    %v348 = vmul.u32.u64.compose %v347, %v346
    %v349 = vextract.low.u32 %v348
    %v350 = vextract.high.u32 %v348
    %v351 = vmul.u32.u64.compose %v347, %v342
    %v352 = vextract.low.u32 %v351
    %v353 = vextract.high.u32 %v351
    %v354 = vmul.u32 %v347, %v338
    %v355 = vadd.s32 %v350, %v352
    %vm356 = vc.u32 %v350, %v352
    %v357 = vadd.s32 %v353, 1
    %v358 = vsel %vm356, %v357, %v353
    %v359 = vadd.s32 %v354, %v358
    %v360 = vadd.s32 %v359, 536870912
    %v361 = vshrl.u32 %v360, 30
    %v362 = vshll.u32 %v361, 30
    %v363 = vsub.s32 %v359, %v362
    %vm364 = vcmp.lt.s32.totalorder %v363, 0
    %v365 = vsub.s32 0, %v363
    %v366 = vsel %vm364, %v365, %v363
    %v367 = vclz %v366
    %v368 = vsub.s32 %v367, 2
    %vm369 = vcmp.gt.s32.totalorder 0, %v368
    %v370 = vsel %vm369, 0, %v368
    %v371 = vsub.s32 32, %v370
    %v372 = vshll.u32 %v363, %v370
    %v373 = vshrl.u32 %v355, %v371
    %v374 = vor.u32 %v372, %v373
    %v375 = vsub.s32 4294967266, %v370
    %v376 = vadd.s32 %v375, 127
    %v377 = vshll.u32 %v376, 23
    %v378 = vor.u32 4788187, %v377
    %v379 = vand.u32 2147483647, %v378
    %v381 = vcvt.s32.f32 %v374
    %v382 = vmul.f32 %v381, %v379
    %v383 = vxor.u32 %v382, 2147483648
    %v384 = vsel %vm301, %v383, %v382
    %v385 = vsub.s32 4, %v361
    %v386 = vsel %vm301, %v385, %v361
    %v387 = vsel %vm300, %v194, %v384
    %v388 = vsel %vm300, 0, %v386
    %v389 = vcosq.f32.pop %v387
    %v390 = vsinq.f32.pop %v387
    %vm391 = vweird.f32 %v194
    %v392 = vand.u32 %v388, 3
    %vm393 = vcmp.lt.s32.totalorder %v392, 2
    %vm394 = vcmp.eq.s32.totalorder %v392, 0
    %v395 = vxor.u32 %v390, 2147483648
    %v396 = vsel %vm394, %v389, %v395
    %vm397 = vcmp.eq.s32.totalorder %v392, 2
    %v398 = vxor.u32 %v389, 2147483648
    %v399 = vsel %vm397, %v398, %v390
    %v400 = vsel %vm393, %v396, %v399
    %v401 = vsel %vm391, nan, %v400
    %v402 = vmul.f32 %v401, %v106
    %v403 = vmul.f32 %v298, %v178
    %v404 = vsub.f32 %v402, %v403
    %405 = vst [vmem:[#allocation2] sm:$0xff] %v404
    %v406 = vmul.f32 %v401, %v178
    %v407 = vmul.f32 %v298, %v106
    %v408 = vadd.f32 %v406, %v407
    %409 = vst [vmem:[#allocation4] sm:$0xff] %v408
    // Predicated region
    $region22: #{tpu_custom_call.1} parent=1 // pred_check
      _
    $region23: #{tpu_custom_call.1} parent=1 // pred_check_branch
      %411 = sbr.rel (0) target = $region25
    $region24: #{tpu_custom_call.1} parent=1 // pred_region
      %s413 = ssub.s32 128, 128
      %414 = vsyncadd [#allocation3], %s413
      %s416 = sshll.u32 [#allocation2], 4
      %s417 = int_to_ptr.vmem [resolvable:$true] %s416
      %419 = dma.vmem_to_hbm [thread:$0]  %s417, 128, %s5, [#allocation3]
    $region25: #{tpu_custom_call.1} parent=1 // pred_fallthru
      _
    // Predicated region
    $region26: #{tpu_custom_call.1} parent=1 // pred_check
      _
    $region27: #{tpu_custom_call.1} parent=1 // pred_check_branch
      %421 = sbr.rel (0) target = $region29
    $region28: #{tpu_custom_call.1} parent=1 // pred_region
      %s423 = ssub.s32 128, 128
      %424 = vsyncadd [#allocation5], %s423
      %s426 = sshll.u32 [#allocation4], 4
      %s427 = int_to_ptr.vmem [resolvable:$true] %s426
      %429 = dma.vmem_to_hbm [thread:$0]  %s427, 128, %s6, [#allocation5]
    $region29: #{tpu_custom_call.1} parent=1 // pred_fallthru
      _
    // Predicated region
    $region30: #{tpu_custom_call.1} parent=1 // pred_check
      _
    $region31: #{tpu_custom_call.1} parent=1 // pred_check_branch
      %431 = sbr.rel (0) target = $region33
    $region32: #{tpu_custom_call.1} parent=1 // pred_region
      %432 = dma.done [#allocation3], 128
    $region33: #{tpu_custom_call.1} parent=1 // pred_fallthru
      _
    // Predicated region
    $region34: #{tpu_custom_call.1} parent=1 // pred_check
      _
    $region35: #{tpu_custom_call.1} parent=1 // pred_check_branch
      %434 = sbr.rel (0) target = $region37
    $region36: #{tpu_custom_call.1} parent=1 // pred_region
      %435 = dma.done [#allocation5], 128
    $region37: #{tpu_custom_call.1} parent=1 // pred_fallthru
      _
    %436 = vsyncpa [#allocation3], 1
    %437 = vsyncpa [#allocation5], 1

</llo_original>
